<compile_context>
chip_gen: v6e
topology: v6e:2x2x1
jax: 0.10.0
libtpu: 0.0.40
codegen_flags: <defaults>
</compile_context>

<pallas_src>
import functools

import jax
import jax.numpy as jnp
import numpy as np
from jax import lax
from jax.experimental import pallas as pl
from jax.experimental.pallas import tpu as pltpu

LANE = 128
# ~2 MiB of f32 per input per grid step (4096 rows x 128 lanes x 4 B).
# 3 inputs x 2 buffers x 2 MiB ~= 12 MiB VMEM -> fits the 32 MiB scoped limit
# we request below on v5e / v6e / v7x.
DEFAULT_TARGET_ROWS_PER_STEP = 4096
DEFAULT_VMEM_LIMIT_BYTES = 32 * 1024 * 1024


def _matching_loss_kernel(p_ref, t_ref, m_ref, o_ref, *,
                          loss_type, rows_data, tile_rows):
    j = pl.program_id(1)

    @pl.when(j == 0)
    def _():
        o_ref[...] = jnp.zeros_like(o_ref)

    p = p_ref[...].astype(jnp.float32)    # (TB, tile_rows, LANE)
    t = t_ref[...].astype(jnp.float32)
    m = m_ref[...].astype(jnp.float32)

    # Factored:  p*m - t*m == d*m,   p*(1-m) - t*(1-m) == d - d*m.
    d = p - t
    du = d * m            # kept region
    dm = d - du           # masked-out region (x10 weight)
    if loss_type == "l1":
        part = jnp.abs(du) + 10.0 * jnp.abs(dm)
    else:  # "l2" -> mse
        part = du * du + 10.0 * (dm * dm)

    tb = part.shape[0]

    def _accumulate(x):
        # Fold tile_rows -> 8 sublanes with elementwise (VPU) adds only; the
        # cross-lane reduce happens once per sample outside the kernel.
        o_ref[...] += x.reshape(tb, -1, 8, LANE).sum(axis=1)

    if rows_data % tile_rows != 0:
        last = pl.num_programs(1) - 1

        @pl.when(j != last)
        def _():
            _accumulate(part)

        @pl.when(j == last)
        def _():
            # Only the last row tile reads past rows_data (OOB VMEM garbage).
            # Keep this a SELECT, not a multiply: garbage may be NaN/Inf and a
            # multiplicative mask would poison the accumulator.
            row_idx = j * tile_rows + lax.broadcasted_iota(
                jnp.int32, part.shape, 1)
            _accumulate(jnp.where(row_idx < rows_data, part, 0.0))
    else:
        _accumulate(part)


def _prep_dtype(x):
    """Keep cheap-to-stream dtypes native in HBM; cast on the loaded tile."""
    if x.dtype == jnp.bool_:
        # 1 B/elt pass instead of a 4 B/elt f32 upcast; Pallas bool refs are
        # finicky, int8 is the safe native carrier.
        return x.astype(jnp.int8)
    if x.dtype in (jnp.float32, jnp.bfloat16, jnp.int8, jnp.uint8, jnp.int32):
        return x
    return x.astype(jnp.float32)


def _sublane_align(dtype):
    itemsize = jnp.dtype(dtype).itemsize
    if itemsize >= 4:
        return 8
    if itemsize == 2:
        return 16
    return 32  # 8-bit inputs need (32, 128) tiling


def _largest_divisor_leq(n, cap):
    cap = max(1, min(n, cap))
    for d in range(cap, 0, -1):
        if n % d == 0:
            return d
    return 1


def matching_loss(predict, target, mask, weights=None, *,
                  loss_type="l1", is_weighted=False,
                  target_rows_per_step=DEFAULT_TARGET_ROWS_PER_STEP,
                  vmem_limit_bytes=DEFAULT_VMEM_LIMIT_BYTES):
    """Pallas implementation of MatchingLoss.forward (returns a scalar)."""
    if loss_type not in ("l1", "l2"):
        raise ValueError(f"invalid loss type {loss_type}")
    assert predict.shape == target.shape == mask.shape
    B = predict.shape[0]
    P = int(np.prod(predict.shape[1:]))  # per-sample element count

    p, t, m = (_prep_dtype(x) for x in (predict, target, mask))
    align = max(_sublane_align(x.dtype) for x in (p, t, m))

    rows = pl.cdiv(P, LANE)
    if (P % LANE != 0) or (rows < align):
        # Slow path (tiny or non-lane-aligned inputs): zero-pad so the slab is
        # (B, rows_data, 128).  Zero padding contributes zero loss (l1 & l2).
        # TODO(synk): if non-lane-aligned P shows up in production, fuse the
        # pad into the upstream producer (or fold the <128-elt tail in JAX
        # glue) instead of paying this extra HBM read+write pass.
        rows_data = max(align, pl.cdiv(rows, align) * align)
        pad = rows_data * LANE - P

        def prep(x):
            x = jnp.reshape(x, (B, P))
            x = jnp.pad(x, ((0, 0), (0, pad)))
            return x.reshape(B, rows_data, LANE)
    else:
        # Fast path: free reshape, no extra HBM pass.
        rows_data = rows

        def prep(x):
            return jnp.reshape(x, (B, rows_data, LANE))

    p3, t3, m3 = prep(p), prep(t), prep(m)

    # Row tile: biggest multiple of `align` up to the target; a ragged last
    # row tile is masked in-kernel (last tile only).
    target_rows = max(align, int(target_rows_per_step))
    tile_rows = max(align, (min(target_rows, rows_data) // align) * align)

    # Batch blocking: when the per-sample slab is small, process TB samples per
    # grid step so each step still moves ~target_rows*128 elements per input.
    tb_target = max(1, target_rows // tile_rows)
    tb = _largest_divisor_leq(B, tb_target)

    grid = (B // tb, pl.cdiv(rows_data, tile_rows))
    # NOTE(v7x): if B // tb == 1 both TCs only engage via the row axis; if
    # xprof shows one TC idle, split the batch-block axis (or use CORE_PARALLEL
    # on the row axis with per-core partial accumulators).

    in_blk = pl.BlockSpec((tb, tile_rows, LANE), lambda b, j: (b, j, 0))
    out_blk = pl.BlockSpec((tb, 8, LANE), lambda b, j: (b, 0, 0))

    kernel = functools.partial(_matching_loss_kernel, loss_type=loss_type,
                               rows_data=rows_data, tile_rows=tile_rows)

    partials = pl.pallas_call(
        kernel,
        out_shape=jax.ShapeDtypeStruct((B, 8, LANE), jnp.float32),
        grid_spec=pltpu.PrefetchScalarGridSpec(
            num_scalar_prefetch=0,
            grid=grid,
            in_specs=[in_blk, in_blk, in_blk],
            out_specs=out_blk,
        ),
        compiler_params=pltpu.CompilerParams(
            dimension_semantics=("parallel", "arbitrary"),
            vmem_limit_bytes=vmem_limit_bytes),
    )(p3, t3, m3)

    # Per-sample mean over flattened dims (== lossu + 10 * lossm), optional
    # per-sample weights, final mean over batch -- tiny JAX glue.
    per_sample = jnp.sum(partials, axis=(1, 2)) / jnp.float32(P)
    loss = per_sample
    if is_weighted and weights is not None:
        loss = jnp.reshape(weights, (-1,)).astype(jnp.float32) * loss
    return jnp.mean(loss)


def _reference(predict, target, mask, weights=None, *,
               loss_type="l1", is_weighted=False):
    p = predict.astype(jnp.float32)
    t = target.astype(jnp.float32)
    m = mask.astype(jnp.float32)
    fn = (lambda a, b: jnp.abs(a - b)) if loss_type == "l1" else (lambda a, b: (a - b) ** 2)
    B = p.shape[0]
    lossm = fn(p * (1 - m), t * (1 - m)).reshape(B, -1).mean(axis=1)
    lossu = fn(p * m, t * m).reshape(B, -1).mean(axis=1)
    loss = lossu + 10.0 * lossm
    if is_weighted and weights is not None:
        loss = jnp.reshape(weights, (-1,)).astype(jnp.float32) * loss
    return jnp.mean(loss)


if __name__ == "__main__":
    key = jax.random.PRNGKey(0)
    kp, kt, km, kw = jax.random.split(key, 4)

    B, C, H, W = 2, 4, 16, 16
    predict = jax.random.normal(kp, (B, C, H, W), dtype=jnp.float32)
    target = jax.random.normal(kt, (B, C, H, W), dtype=jnp.float32)
    mask_bool = jax.random.uniform(km, (B, C, H, W)) > 0.5
    mask_f32 = mask_bool.astype(jnp.float32)
    weights = jax.random.uniform(kw, (B,), dtype=jnp.float32)

    checks = []

    # l1, unweighted, f32 mask (fast path, batch-blocked, single row tile).
    out1 = jax.block_until_ready(
        matching_loss(predict, target, mask_f32, loss_type="l1"))
    checks.append(("l1", out1,
                   _reference(predict, target, mask_f32, loss_type="l1")))

    # l2, weighted.
    out2 = jax.block_until_ready(
        matching_loss(predict, target, mask_f32, weights,
                      loss_type="l2", is_weighted=True))
    checks.append(("l2_weighted", out2,
                   _reference(predict, target, mask_f32, weights,
                              loss_type="l2", is_weighted=True)))

    # Native non-f32 mask path: bool -> int8 in HBM, cast on the loaded tile
    # (align=32 -> padded slow path with 8-bit blocks).
    out3 = jax.block_until_ready(
        matching_loss(predict, target, mask_bool, loss_type="l1"))
    checks.append(("bool_mask", out3,
                   _reference(predict, target, mask_f32, loss_type="l1")))

    # Ragged last row tile + batch-blocked: rows=12, tile_rows=8, TB=2.
    pr = jax.random.normal(kp, (B, 4, 24, 16), dtype=jnp.float32)
    tr = jax.random.normal(kt, (B, 4, 24, 16), dtype=jnp.float32)
    mr = (jax.random.uniform(km, (B, 4, 24, 16)) > 0.5).astype(jnp.float32)
    out4 = jax.block_until_ready(
        matching_loss(pr, tr, mr, loss_type="l1"))
    checks.append(("ragged_batched", out4,
                   _reference(pr, tr, mr, loss_type="l1")))

    # Non-batch-blocked (TB=1) multi-row-tile path via a small step target.
    out5 = jax.block_until_ready(
        matching_loss(pr, tr, mr, loss_type="l2", target_rows_per_step=8))
    checks.append(("ragged_tb1", out5,
                   _reference(pr, tr, mr, loss_type="l2")))

    for name, got, ref in checks:
        assert np.allclose(np.asarray(got), np.asarray(ref),
                           rtol=1e-5, atol=1e-5), (name, got, ref)

    print("KERNEL_OK")
</pallas_src>

<mosaic_0001>
module attributes {stable_mosaic.version = 11 : i64} {
  func.func @_matching_loss_kernel(%arg0: i32, %arg1: i32, %arg2: memref<2x8x128xf32, #tpu.memory_space<vmem>>, %arg3: memref<2x8x128xf32, #tpu.memory_space<vmem>>, %arg4: memref<2x8x128xf32, #tpu.memory_space<vmem>>, %arg5: memref<2x8x128xf32, #tpu.memory_space<vmem>>) attributes {dimension_semantics = [#tpu.dimension_semantics<parallel>, #tpu.dimension_semantics<arbitrary>], iteration_bounds = array<i64: 1, 1>, scalar_prefetch = 0 : i64, scratch_operands = 0 : i64, tpu.core_type = #tpu.core_type<tc>, window_params = [{transform_indices = @transform_0, window_bounds = array<i64: 2, 8, 128>}, {transform_indices = @transform_1, window_bounds = array<i64: 2, 8, 128>}, {transform_indices = @transform_2, window_bounds = array<i64: 2, 8, 128>}, {transform_indices = @transform_3, window_bounds = array<i64: 2, 8, 128>}]} {
    %c0_i32 = arith.constant 0 : i32
    %0 = arith.cmpi eq, %arg1, %c0_i32 : i32
    %1 = arith.extui %0 : i1 to i32
    %c0_i32_0 = arith.constant 0 : i32
    %2 = arith.cmpi ne, %1, %c0_i32_0 : i32
    scf.if %2 {
      %cst_16 = arith.constant 0.000000e+00 : f32
      %19 = vector.broadcast %cst_16 : f32 to vector<2x8x128xf32>
      %c0_17 = arith.constant 0 : index
      %c0_18 = arith.constant 0 : index
      %c0_19 = arith.constant 0 : index
      %20 = vector.load %arg5[%c0_17, %c0_18, %c0_19] : memref<2x8x128xf32, #tpu.memory_space<vmem>>, vector<2x8x128xf32>
      tpu.vector_store %arg5[%c0_17, %c0_18, %c0_19], %19 {strides = array<i32>} : memref<2x8x128xf32, #tpu.memory_space<vmem>>, vector<2x8x128xf32>,
    } else {
    }
    %c0 = arith.constant 0 : index
    %c0_1 = arith.constant 0 : index
    %c0_2 = arith.constant 0 : index
    %3 = vector.load %arg2[%c0, %c0_1, %c0_2] : memref<2x8x128xf32, #tpu.memory_space<vmem>>, vector<2x8x128xf32>
    %c0_3 = arith.constant 0 : index
    %c0_4 = arith.constant 0 : index
    %c0_5 = arith.constant 0 : index
    %4 = vector.load %arg3[%c0_3, %c0_4, %c0_5] : memref<2x8x128xf32, #tpu.memory_space<vmem>>, vector<2x8x128xf32>
    %c0_6 = arith.constant 0 : index
    %c0_7 = arith.constant 0 : index
    %c0_8 = arith.constant 0 : index
    %5 = vector.load %arg4[%c0_6, %c0_7, %c0_8] : memref<2x8x128xf32, #tpu.memory_space<vmem>>, vector<2x8x128xf32>
    %6 = arith.subf %3, %4 : vector<2x8x128xf32>
    %7 = arith.mulf %6, %5 : vector<2x8x128xf32>
    %8 = arith.subf %6, %7 : vector<2x8x128xf32>
    %9 = math.absf %7 : vector<2x8x128xf32>
    %10 = math.absf %8 : vector<2x8x128xf32>
    %cst = arith.constant 1.000000e+01 : f32
    %11 = vector.broadcast %cst : f32 to vector<2x8x128xf32>
    %12 = arith.mulf %11, %10 : vector<2x8x128xf32>
    %13 = arith.addf %9, %12 : vector<2x8x128xf32>
    %c0_9 = arith.constant 0 : index
    %c0_10 = arith.constant 0 : index
    %c0_11 = arith.constant 0 : index
    %14 = vector.load %arg5[%c0_9, %c0_10, %c0_11] : memref<2x8x128xf32, #tpu.memory_space<vmem>>, vector<2x8x128xf32>
    %15 = vector.shape_cast %13 : vector<2x8x128xf32> to vector<2x1x8x128xf32>
    %cst_12 = arith.constant dense<0.000000e+00> : vector<2x8x128xf32>
    %16 = vector.multi_reduction <add>, %15, %cst_12 [1] : vector<2x1x8x128xf32> to vector<2x8x128xf32>
    %17 = arith.addf %14, %16 : vector<2x8x128xf32>
    %c0_13 = arith.constant 0 : index
    %c0_14 = arith.constant 0 : index
    %c0_15 = arith.constant 0 : index
    %18 = vector.load %arg5[%c0_13, %c0_14, %c0_15] : memref<2x8x128xf32, #tpu.memory_space<vmem>>, vector<2x8x128xf32>
    tpu.vector_store %arg5[%c0_13, %c0_14, %c0_15], %17 {strides = array<i32>} : memref<2x8x128xf32, #tpu.memory_space<vmem>>, vector<2x8x128xf32>,
    return
  }
  func.func @transform_0(%arg0: i32, %arg1: i32) -> (i32, i32, i32) {
    %c0_i32 = arith.constant 0 : i32
    %c0_i32_0 = arith.constant 0 : i32
    return %arg0, %arg1, %c0_i32 : i32, i32, i32
  }
  func.func @transform_1(%arg0: i32, %arg1: i32) -> (i32, i32, i32) {
    %c0_i32 = arith.constant 0 : i32
    %c0_i32_0 = arith.constant 0 : i32
    return %arg0, %arg1, %c0_i32 : i32, i32, i32
  }
  func.func @transform_2(%arg0: i32, %arg1: i32) -> (i32, i32, i32) {
    %c0_i32 = arith.constant 0 : i32
    %c0_i32_0 = arith.constant 0 : i32
    return %arg0, %arg1, %c0_i32 : i32, i32, i32
  }
  func.func @transform_3(%arg0: i32, %arg1: i32) -> (i32, i32, i32) {
    %c0_i32 = arith.constant 0 : i32
    %c0_i32_0 = arith.constant 0 : i32
    %c0_i32_1 = arith.constant 0 : i32
    return %arg0, %c0_i32, %c0_i32_0 : i32, i32, i32
  }
}

</mosaic_0001>

<llo_original>
// kernel: tpu_custom_call.1
$region0: #{tpu_custom_call.1}
  #allocation0 [shape = 'u32[]', space=smem, size = 0x4, offset = 0x4, fixed_abs, tag = 'smem constant byte address 0x4 - core index']
  #allocation1 [shape = 'u32[144,128]{1,0:T(1,128)}', space=vmem, size = 0x12000, scoped, tag = 'internal scratch']
  %s0 = inlined_call_operand.hbm [shape: f32[2,8,128], index: 0, kind: input, shape index: {}]
  %s1 = inlined_call_operand.hbm [shape: f32[2,8,128], index: 1, kind: input, shape index: {}]
  %s2 = inlined_call_operand.hbm [shape: f32[2,8,128], index: 2, kind: input, shape index: {}]
  %s3 = inlined_call_operand.hbm [shape: f32[2,8,128], index: 3, kind: output, shape index: {}]
  %s4 = sld [smem:[#allocation0]]
  $region38: #{tpu_custom_call.1} parent=0
    _
  %s6 = ssub.s32 1, %s4
  %s7 = scalar_select 0, %s6, %s4
  $region1: #{tpu_custom_call.1} parent=0
    #allocation2 [shape = 'u8[8192]{0}', space=vmem, size = 0x2000, scoped, tag = 'input window, operand 0, single buffered']
    #allocation3 [shape = 's32[1]{0}', space=sflag, size = 0x4, scoped, tag = 'scoped memory for tpu_custom_call.1']
    #allocation4 [shape = 's32[1]{0}', space=sflag, size = 0x4, scoped, tag = 'scoped memory for tpu_custom_call.1']
    #allocation5 [shape = 'u8[8192]{0}', space=vmem, size = 0x2000, scoped, tag = 'input window, operand 1, single buffered']
    #allocation6 [shape = 's32[1]{0}', space=sflag, size = 0x4, scoped, tag = 'scoped memory for tpu_custom_call.1']
    #allocation7 [shape = 'u8[8192]{0}', space=vmem, size = 0x2000, scoped, tag = 'input window, operand 2, single buffered']
    #allocation8 [shape = 'u8[8192]{0}', space=vmem, size = 0x2000, scoped, tag = 'output window, operand 0, single buffered']
    %8 = vsyncpa [#allocation3], 0
    %9 = vsyncpa [#allocation6], 0
    %10 = vsyncpa [#allocation4], 0
    // Predicated region
    $region2: #{tpu_custom_call.1} parent=1 // pred_check
      _
    $region3: #{tpu_custom_call.1} parent=1 // pred_check_branch
      %12 = sbr.rel (0) target = $region5
    $region4: #{tpu_custom_call.1} parent=1 // pred_region
      %s14 = ssub.s32 256, 256
      %15 = vsyncadd [#allocation3], %s14
      %s16 = sshll.u32 [#allocation2], 4
      %s17 = int_to_ptr.vmem [resolvable:$true] %s16
      %22 = dma.hbm_to_vmem [thread:$0]  %s0, 256, %s17, [#allocation3], 128, 128, 8
    $region5: #{tpu_custom_call.1} parent=1 // pred_fallthru
      _
    // Predicated region
    $region6: #{tpu_custom_call.1} parent=1 // pred_check
      _
    $region7: #{tpu_custom_call.1} parent=1 // pred_check_branch
      %24 = sbr.rel (0) target = $region9
    $region8: #{tpu_custom_call.1} parent=1 // pred_region
      %s26 = ssub.s32 256, 256
      %27 = vsyncadd [#allocation6], %s26
      %s28 = sshll.u32 [#allocation5], 4
      %s29 = int_to_ptr.vmem [resolvable:$true] %s28
      %34 = dma.hbm_to_vmem [thread:$0]  %s1, 256, %s29, [#allocation6], 128, 128, 8
    $region9: #{tpu_custom_call.1} parent=1 // pred_fallthru
      _
    // Predicated region
    $region10: #{tpu_custom_call.1} parent=1 // pred_check
      _
    $region11: #{tpu_custom_call.1} parent=1 // pred_check_branch
      %36 = sbr.rel (0) target = $region13
    $region12: #{tpu_custom_call.1} parent=1 // pred_region
      %s38 = ssub.s32 256, 256
      %39 = vsyncadd [#allocation6], %s38
      %s40 = sshll.u32 [#allocation7], 4
      %s41 = int_to_ptr.vmem [resolvable:$true] %s40
      %46 = dma.hbm_to_vmem [thread:$0]  %s2, 256, %s41, [#allocation6], 128, 128, 8
    $region13: #{tpu_custom_call.1} parent=1 // pred_fallthru
      _
    // Predicated region
    $region14: #{tpu_custom_call.1} parent=1 // pred_check
      _
    $region15: #{tpu_custom_call.1} parent=1 // pred_check_branch
      %48 = sbr.rel (0) target = $region17
    $region16: #{tpu_custom_call.1} parent=1 // pred_region
      %49 = dma.done [#allocation3], 256
    $region17: #{tpu_custom_call.1} parent=1 // pred_fallthru
      _
    // Predicated region
    $region18: #{tpu_custom_call.1} parent=1 // pred_check
      _
    $region19: #{tpu_custom_call.1} parent=1 // pred_check_branch
      %51 = sbr.rel (0) target = $region21
    $region20: #{tpu_custom_call.1} parent=1 // pred_region
      %52 = dma.done [#allocation6], 256
    $region21: #{tpu_custom_call.1} parent=1 // pred_fallthru
      _
    // Predicated region
    $region22: #{tpu_custom_call.1} parent=1 // pred_check
      _
    $region23: #{tpu_custom_call.1} parent=1 // pred_check_branch
      %54 = sbr.rel (0) target = $region25
    $region24: #{tpu_custom_call.1} parent=1 // pred_region
      %55 = dma.done [#allocation6], 256
    $region25: #{tpu_custom_call.1} parent=1 // pred_fallthru
      _
    %p56 = scmp.eq.s32.totalorder 0, 0
    // Predicated region
    $region26: #{tpu_custom_call.1} parent=1 // pred_check
      %p57 = pneg %p56
    $region27: #{tpu_custom_call.1} parent=1 // pred_check_branch
      %59 = sbr.rel (%p57) target = $region29
    $region28: #{tpu_custom_call.1} parent=1 // pred_region
      %60 = vst [vmem:[#allocation8] sm:$0xff] 0.0
      %61 = vst [vmem:[#allocation8 + $0x8] sm:$0xff] 0.0
    $region29: #{tpu_custom_call.1} parent=1 // pred_fallthru
      _
    %v62 = vld [vmem:[#allocation2] sm:$0xff]
    %v63 = vld [vmem:[#allocation2 + $0x8] sm:$0xff]
    %v64 = vld [vmem:[#allocation5] sm:$0xff]
    %v65 = vld [vmem:[#allocation5 + $0x8] sm:$0xff]
    %v66 = vld [vmem:[#allocation7] sm:$0xff]
    %v67 = vld [vmem:[#allocation7 + $0x8] sm:$0xff]
    %v68 = vsub.f32 %v62, %v64
    %v69 = vsub.f32 %v63, %v65
    %v70 = vmul.f32 %v68, %v66
    %v71 = vmul.f32 %v69, %v67
    %v72 = vsub.f32 %v68, %v70
    %v73 = vsub.f32 %v69, %v71
    %v74 = vand.u32 2147483647, %v70
    %v75 = vand.u32 2147483647, %v71
    %v76 = vand.u32 2147483647, %v72
    %v77 = vand.u32 2147483647, %v73
    %v78 = vmul.f32 %v76, 10.0
    %v79 = vmul.f32 %v77, 10.0
    %v80 = vadd.f32 %v74, %v78
    %v81 = vadd.f32 %v75, %v79
    %v82 = vld [vmem:[#allocation8] sm:$0xff]
    %v83 = vld [vmem:[#allocation8 + $0x8] sm:$0xff]
    %v84 = vadd.f32 %v80, 0.0
    %v85 = vadd.f32 %v81, 0.0
    %v86 = vadd.f32 %v82, %v84
    %v87 = vadd.f32 %v83, %v85
    %88 = vst [vmem:[#allocation8] sm:$0xff] %v86
    %89 = vst [vmem:[#allocation8 + $0x8] sm:$0xff] %v87
    // Predicated region
    $region30: #{tpu_custom_call.1} parent=1 // pred_check
      _
    $region31: #{tpu_custom_call.1} parent=1 // pred_check_branch
      %91 = sbr.rel (0) target = $region33
    $region32: #{tpu_custom_call.1} parent=1 // pred_region
      %s93 = ssub.s32 256, 256
      %94 = vsyncadd [#allocation4], %s93
      %s95 = sshll.u32 [#allocation8], 4
      %s96 = int_to_ptr.vmem [resolvable:$true] %s95
      %101 = dma.vmem_to_hbm [thread:$0]  %s96, 256, %s3, [#allocation4], 128, 128, 8
    $region33: #{tpu_custom_call.1} parent=1 // pred_fallthru
      _
    // Predicated region
    $region34: #{tpu_custom_call.1} parent=1 // pred_check
      _
    $region35: #{tpu_custom_call.1} parent=1 // pred_check_branch
      %103 = sbr.rel (0) target = $region37
    $region36: #{tpu_custom_call.1} parent=1 // pred_region
      %104 = dma.done [#allocation4], 256
    $region37: #{tpu_custom_call.1} parent=1 // pred_fallthru
      _
    %105 = vsyncpa [#allocation3], 1
    %106 = vsyncpa [#allocation6], 1
    %107 = vsyncpa [#allocation4], 1

</llo_original>
